<compile_context>
chip_gen: v7x
topology: tpu7x:2x2x1
jax: 0.10.0
libtpu: 0.0.40
codegen_flags: <defaults>
</compile_context>

<pallas_src>
import jax
import jax.numpy as jnp
from jax.experimental import pallas as pl
from jax.experimental.pallas import tpu as pltpu

_VMEM_LIMIT_BYTES = 48 * 1024 * 1024      # < 64 MiB physical on v7x, > defaults
_BUFFER_BUDGET_BYTES = 2 * 1024 * 1024    # per pipeline buffer (x4 when double-buffered)


def _sublane_multiple(dtype) -> int:
    """Second-to-last-dim packing granularity for a dtype."""
    return {4: 8, 2: 16, 1: 32}.get(jnp.dtype(dtype).itemsize, 8)


def _choose_row_tile(rows: int, row_bytes: int, dtype) -> int:
    """Largest legal row tile under the per-buffer VMEM budget."""
    sub = _sublane_multiple(dtype)
    max_rows = max(sub, _BUFFER_BUDGET_BYTES // max(1, row_bytes))
    if rows <= max_rows:
        return rows                       # full axis is always a legal block dim
    return max(sub, (max_rows // sub) * sub)


# ---------------------------------------------------------------------------
# 3D path: (B, T, D) -> (B, n*T, D)
# ---------------------------------------------------------------------------
def _bcast_repeat_kernel(x_ref, o_ref):
    # x_ref: (TR, D); o_ref: (NR, TR, D).  Batch dim squeezed by the BlockSpecs.
    # Broadcast the resident input tile across the fused repeat axis: one VMEM
    # read, NR lane-dense stores, one big DMA writeback.
    o_ref[...] = jnp.broadcast_to(x_ref[...][None, :, :], o_ref.shape)


def _repeat_3d(x, n: int, row_tile=None, repeat_tile=None):
    B, T, D = x.shape
    itemsize = jnp.dtype(x.dtype).itemsize
    row_bytes = D * itemsize

    tr = row_tile if row_tile is not None else _choose_row_tile(T, row_bytes, x.dtype)
    tr = min(tr, T)
    nt = pl.cdiv(T, tr)

    # Fold as many repeats as fit the per-buffer budget into one output block
    # (fewer grid steps; every fused repeat is a full unmasked tile store).
    if repeat_tile is not None:
        nr = max(1, min(n, repeat_tile))
    else:
        nr = max(1, min(n, _BUFFER_BUDGET_BYTES // max(1, tr * row_bytes)))
    nrb = pl.cdiv(n, nr)

    out4 = pl.pallas_call(
        _bcast_repeat_kernel,
        out_shape=jax.ShapeDtypeStruct((B, n, T, D), x.dtype),
        # Repeat axis innermost: input block index ignores it -> 1x HBM reads.
        grid=(B, nt, nrb),
        in_specs=[pl.BlockSpec((None, tr, D), lambda b, r, i: (b, r, 0))],
        out_specs=pl.BlockSpec((None, nr, tr, D), lambda b, r, i: (b, i, r, 0)),
        compiler_params=pltpu.CompilerParams(
            dimension_semantics=("parallel", "parallel", "arbitrary"),
            vmem_limit_bytes=_VMEM_LIMIT_BYTES),
    )(x)
    # (B, n, T, D) -> (B, n*T, D) is a free row-major reshape (same layout).
    return out4.reshape(B, n * T, D)


# ---------------------------------------------------------------------------
# 2D path: (B, D) -> (B, n, D)
# ---------------------------------------------------------------------------
def _lane_tile_kernel(x_ref, o_ref):
    # x_ref: (TB, D), o_ref: (TB, n*D).  Lane-dense, unmasked stores.
    x = x_ref[...]
    reps = o_ref.shape[-1] // x.shape[-1]
    o_ref[...] = jnp.concatenate([x] * reps, axis=-1)


def _sublane_bcast_kernel(x_ref, o_ref):
    # x_ref: (TB, D), o_ref: (TB, n, D).  Cheap sublane broadcast.
    x = x_ref[...]
    o_ref[...] = jnp.broadcast_to(x[:, None, :], o_ref.shape)


def _repeat_2d(x, n: int):
    B, D = x.shape
    itemsize = jnp.dtype(x.dtype).itemsize
    # Budget against the (bigger) output row: n*D elements per input row.
    tb = _choose_row_tile(B, n * D * itemsize, x.dtype)
    nb = pl.cdiv(B, tb)
    params = pltpu.CompilerParams(
        dimension_semantics=("parallel",),
        vmem_limit_bytes=_VMEM_LIMIT_BYTES)

    if D % 128 == 0:
        # Lane-dense output slab (B, n*D); reshape to (B, n, D) is free.
        out = pl.pallas_call(
            _lane_tile_kernel,
            out_shape=jax.ShapeDtypeStruct((B, n * D), x.dtype),
            grid=(nb,),
            in_specs=[pl.BlockSpec((tb, D), lambda b: (b, 0))],
            out_specs=pl.BlockSpec((tb, n * D), lambda b: (b, 0)),
            compiler_params=params,
        )(x)
        return out.reshape(B, n, D)

    # Fallback for lane-unaligned D: sublane broadcast into (TB, n, D) blocks.
    return pl.pallas_call(
        _sublane_bcast_kernel,
        out_shape=jax.ShapeDtypeStruct((B, n, D), x.dtype),
        grid=(nb,),
        in_specs=[pl.BlockSpec((tb, D), lambda b: (b, 0))],
        out_specs=pl.BlockSpec((tb, n, D), lambda b: (b, 0, 0)),
        compiler_params=params,
    )(x)


def repeat_vector(x, n: int, *, row_tile=None, repeat_tile=None):
    """Pallas implementation of RepeatVector(n).forward(x)."""
    if x.ndim == 3:
        return _repeat_3d(x, n, row_tile=row_tile, repeat_tile=repeat_tile)
    if x.ndim == 2:
        return _repeat_2d(x, n)
    raise ValueError(f"RepeatVector expects 2D or 3D input, got ndim={x.ndim}")


if __name__ == "__main__":
    key = jax.random.PRNGKey(0)
    k1, k2, k3, k4, k5 = jax.random.split(key, 5)

    # --- 3D, lane-aligned D, repeats fused into one block: (2,8,128)->(2,24,128)
    n = 3
    B, T, D = 2, 8, 128
    x3 = jax.random.normal(k1, (B, T, D), dtype=jnp.float32)
    out3 = jax.block_until_ready(repeat_vector(x3, n))
    ref3 = jnp.tile(x3, (1, n, 1))
    assert out3.shape == (B, n * T, D) and out3.dtype == x3.dtype
    assert jnp.array_equal(out3, ref3), "3D repeat mismatch"

    # --- 3D, multi-tile over T (forced row_tile=8): (2,24,32) -> (2,48,32) ---
    n_b = 2
    Bb, Tb, Db = 2, 24, 32
    x3b = jax.random.normal(k2, (Bb, Tb, Db), dtype=jnp.float32)
    out3b = jax.block_until_ready(repeat_vector(x3b, n_b, row_tile=8))
    ref3b = jnp.tile(x3b, (1, n_b, 1))
    assert out3b.shape == (Bb, n_b * Tb, Db) and out3b.dtype == x3b.dtype
    assert jnp.array_equal(out3b, ref3b), "3D tiled repeat mismatch"

    # --- 3D, partial repeat block (repeat_tile=2, n=3): (2,16,128)->(2,48,128)
    n_c = 3
    Bc, Tc, Dc = 2, 16, 128
    x3c = jax.random.normal(k3, (Bc, Tc, Dc), dtype=jnp.float32)
    out3c = jax.block_until_ready(repeat_vector(x3c, n_c, row_tile=8, repeat_tile=2))
    ref3c = jnp.tile(x3c, (1, n_c, 1))
    assert out3c.shape == (Bc, n_c * Tc, Dc) and out3c.dtype == x3c.dtype
    assert jnp.array_equal(out3c, ref3c), "3D fused-repeat (partial block) mismatch"

    # --- 2D, lane-aligned D (dense (B, n*D) path): (4, 128) -> (4, 4, 128) ---
    n2 = 4
    B2, D2 = 4, 128
    x2 = jax.random.normal(k4, (B2, D2), dtype=jnp.float32)
    out2 = jax.block_until_ready(repeat_vector(x2, n2))
    ref2 = jnp.tile(x2[:, None, :], (1, n2, 1))
    assert out2.shape == (B2, n2, D2) and out2.dtype == x2.dtype
    assert jnp.array_equal(out2, ref2), "2D repeat mismatch (aligned)"

    # --- 2D, lane-unaligned D (broadcast fallback): (2, 32) -> (2, 3, 32) ---
    n3 = 3
    B3, D3 = 2, 32
    x2b = jax.random.normal(k5, (B3, D3), dtype=jnp.float32)
    out2b = jax.block_until_ready(repeat_vector(x2b, n3))
    ref2b = jnp.tile(x2b[:, None, :], (1, n3, 1))
    assert out2b.shape == (B3, n3, D3) and out2b.dtype == x2b.dtype
    assert jnp.array_equal(out2b, ref2b), "2D repeat mismatch (unaligned)"

    print("KERNEL_OK")
</pallas_src>

<mosaic_0001>
module attributes {stable_mosaic.version = 11 : i64} {
  func.func @_bcast_repeat_kernel(%arg0: i32, %arg1: i32, %arg2: i32, %arg3: memref<1x8x128xf32, #tpu.memory_space<vmem>>, %arg4: memref<1x3x8x128xf32, #tpu.memory_space<vmem>>) attributes {dimension_semantics = [#tpu.dimension_semantics<parallel>, #tpu.dimension_semantics<parallel>, #tpu.dimension_semantics<arbitrary>], iteration_bounds = array<i64: 2, 1, 1>, scalar_prefetch = 0 : i64, scratch_operands = 0 : i64, tpu.core_type = #tpu.core_type<tc>, window_params = [{transform_indices = @transform_0, window_bounds = array<i64: 1, 8, 128>}, {transform_indices = @transform_1, window_bounds = array<i64: 1, 3, 8, 128>}]} {
    %c0 = arith.constant 0 : index
    %c0_0 = arith.constant 0 : index
    %c0_1 = arith.constant 0 : index
    %0 = vector.load %arg3[%c0, %c0_0, %c0_1] : memref<1x8x128xf32, #tpu.memory_space<vmem>>, vector<1x8x128xf32>
    %1 = vector.shape_cast %0 : vector<1x8x128xf32> to vector<8x128xf32>
    %2 = vector.shape_cast %1 : vector<8x128xf32> to vector<1x8x128xf32>
    %3 = vector.shape_cast %2 : vector<1x8x128xf32> to vector<1x8x128xf32>
    %4 = vector.broadcast %3 : vector<1x8x128xf32> to vector<3x8x128xf32>
    %c0_2 = arith.constant 0 : index
    %c0_3 = arith.constant 0 : index
    %c0_4 = arith.constant 0 : index
    %c0_5 = arith.constant 0 : index
    %5 = vector.load %arg4[%c0_2, %c0_3, %c0_4, %c0_5] : memref<1x3x8x128xf32, #tpu.memory_space<vmem>>, vector<1x3x8x128xf32>
    %6 = vector.shape_cast %5 : vector<1x3x8x128xf32> to vector<3x8x128xf32>
    %7 = vector.shape_cast %4 : vector<3x8x128xf32> to vector<1x3x8x128xf32>
    tpu.vector_store %arg4[%c0_2, %c0_3, %c0_4, %c0_5], %7 {strides = array<i32>} : memref<1x3x8x128xf32, #tpu.memory_space<vmem>>, vector<1x3x8x128xf32>,
    return
  }
  func.func @transform_0(%arg0: i32, %arg1: i32, %arg2: i32) -> (i32, i32, i32) {
    %c0_i32 = arith.constant 0 : i32
    %c0_i32_0 = arith.constant 0 : i32
    return %arg0, %arg1, %c0_i32 : i32, i32, i32
  }
  func.func @transform_1(%arg0: i32, %arg1: i32, %arg2: i32) -> (i32, i32, i32, i32) {
    %c0_i32 = arith.constant 0 : i32
    %c0_i32_0 = arith.constant 0 : i32
    return %arg0, %arg2, %arg1, %c0_i32 : i32, i32, i32, i32
  }
}

</mosaic_0001>

<llo_original>
// kernel: tpu_custom_call.1
$region0: #{tpu_custom_call.1}
  #allocation0 [shape = 'u32[]', space=smem, size = 0x4, offset = 0x4, fixed_abs, tag = 'smem constant byte address 0x4 - core index']
  #allocation1 [shape = 'u32[144,128]{1,0:T(1,128)}', space=vmem, size = 0x12000, scoped, tag = 'internal scratch']
  %s0 = inlined_call_operand.hbm [shape: f32[2,8,128], index: 0, kind: input, shape index: {}]
  %s1 = inlined_call_operand.hbm [shape: f32[2,3,8,128], index: 1, kind: output, shape index: {}]
  %s2 = sld [smem:[#allocation0]]
  $region41: #{tpu_custom_call.1} parent=0
    _
  %s4 = ssub.s32 1, %s2
  %s5 = scalar_select 0, %s4, %s2
  $region1: #{tpu_custom_call.1} parent=0
    #allocation2 [shape = 'u8[8192]{0}', space=vmem, size = 0x2000, scoped, tag = 'input window, operand 0']
    #allocation3 [shape = 's32[2]{0}', space=sflag, size = 0x8, scoped, tag = 'scoped memory for tpu_custom_call.1']
    #allocation4 [shape = 's32[2]{0}', space=sflag, size = 0x8, scoped, tag = 'scoped memory for tpu_custom_call.1']
    #allocation5 [shape = 'u8[24576]{0}', space=vmem, size = 0x6000, scoped, tag = 'output window, operand 0']
    %6 = vsyncpa [#allocation3], 0
    %s7 = scalar_lea.sflag [#allocation3], 1
    %8 = vsyncpa %s7, 0
    %9 = vsyncpa [#allocation4], 0
    %s10 = scalar_lea.sflag [#allocation4], 1
    %11 = vsyncpa %s10, 0
    loop: start=0, step=1, limit=4
    $region2: #{tpu_custom_call.1} parent=1 // loop_pre_header
      _
    $region3: #{tpu_custom_call.1} parent=1 // loop_header
      %s13 = sphi 0, %s17
      %p14 = scmp.ge.s32.totalorder %s13, 4
      %s20 = sphi 0, %s39
      %s21 = sphi 0, %s35
      %s22 = sphi 0, %s31
      %s23 = sphi 0, %s20
      %s24 = sphi 0, %s21
      %s25 = sphi 0, %s22
      %s26 = sphi 0, %s23
      %s27 = sphi 0, %s24
      %s28 = sphi 0, %s25
      %s44 = sphi 0, %s46
      %s47 = sphi 0, %s44
      %s48 = sphi 0, %s47
      %s64 = sphi 0, %s48
      %s74 = sphi 0, %s76
      %s77 = sphi 0, %s74
      %s78 = sphi 0, %s77
      %s94 = sphi 0, %s78
    $region4: #{tpu_custom_call.1} parent=1 // loop_header_branch
      %16 = sbr.rel (%p14) target = $region8
    $region5: #{tpu_custom_call.1} parent=1 // loop_body
      %s18 = ssub.s32 %s13, 1
      %s19 = ssub.s32 %s13, 2
      %s29 = sadd.s32 1, %s22
      %p30 = scmp.ge.s32.totalorder %s29, 1
      %s31 = scalar_select %p30, 0, %s29
      %s32 = sadd.s32 1, %s21
      %s33 = scalar_select %p30, %s32, %s21
      %p34 = scmp.ge.s32.totalorder %s33, 1
      %s35 = scalar_select %p34, 0, %s33
      %s36 = sadd.s32 1, %s20
      %s37 = scalar_select %p34, %s36, %s20
      %p38 = scmp.ge.s32.totalorder %s37, 2
      %s39 = scalar_select %p38, 0, %s37
      %s40 = ssub.s32 %s20, %s39
      %s41 = ssub.s32 %s21, %s35
      %s42 = sor.u32 %s40, %s41
      %p43 = scmp.eq.s32.totalorder %s42, 0
      %s45 = sadd.s32 %s44, 1
      %s46 = scalar_select %p43, %s44, %s45
      %p49 = pneg %p43
      %p50 = scmp.eq.s32.totalorder %s13, 1
      %p51 = por %p49, %p50
      %p52 = scmp.ne.s32.totalorder %s44, %s47
      %p53 = scmp.eq.s32.totalorder %s13, 0
      %p54 = por %p52, %p53
      %p55 = scmp.ne.s32.totalorder %s44, %s47
      %p56 = scmp.eq.s32.totalorder %s18, 1
      %p57 = por %p55, %p56
      %p58 = scmp.ne.s32.totalorder %s47, %s48
      %p59 = scmp.eq.s32.totalorder %s18, 0
      %p60 = por %p58, %p59
      %p61 = scmp.ne.s32.totalorder %s47, %s48
      %p62 = scmp.eq.s32.totalorder %s19, 1
      %p63 = por %p61, %p62
      %p65 = scmp.ne.s32.totalorder %s48, %s64
      %p66 = scmp.eq.s32.totalorder %s19, 0
      %p67 = por %p65, %p66
      %s68 = ssub.s32 %s20, %s39
      %s69 = ssub.s32 %s22, %s31
      %s70 = sor.u32 %s68, %s69
      %s71 = ssub.s32 %s21, %s35
      %s72 = sor.u32 %s70, %s71
      %p73 = scmp.eq.s32.totalorder %s72, 0
      %s75 = sadd.s32 %s74, 1
      %s76 = scalar_select %p73, %s74, %s75
      %p79 = pneg %p73
      %p80 = scmp.eq.s32.totalorder %s13, 1
      %p81 = por %p79, %p80
      %p82 = scmp.ne.s32.totalorder %s74, %s77
      %p83 = scmp.eq.s32.totalorder %s13, 0
      %p84 = por %p82, %p83
      %p85 = scmp.ne.s32.totalorder %s74, %s77
      %p86 = scmp.eq.s32.totalorder %s18, 1
      %p87 = por %p85, %p86
      %p88 = scmp.ne.s32.totalorder %s77, %s78
      %p89 = scmp.eq.s32.totalorder %s18, 0
      %p90 = por %p88, %p89
      %p91 = scmp.ne.s32.totalorder %s77, %s78
      %p92 = scmp.eq.s32.totalorder %s19, 1
      %p93 = por %p91, %p92
      %p95 = scmp.ne.s32.totalorder %s78, %s94
      %p96 = scmp.eq.s32.totalorder %s19, 0
      %p97 = por %p95, %p96
      %p98 = scmp.le.s32.totalorder 1, %s13
      %p99 = scmp.lt.s32.totalorder %s13, 3
      %p100 = pnand %p98, %p99
      %p101 = pneg %p100
      // Predicated region
      $region9: #{tpu_custom_call.1} parent=5 // pred_check
        _
      $region10: #{tpu_custom_call.1} parent=5 // pred_check_branch
        %103 = sbr.rel (%p100) target = $region12
      $region11: #{tpu_custom_call.1} parent=5 // pred_region
        %s104 = ssub.s32 %s13, 1
      $region12: #{tpu_custom_call.1} parent=5 // pred_fallthru
        _
      %p105 = scmp.lt.s32.totalorder %s13, 2
      // Predicated region
      $region13: #{tpu_custom_call.1} parent=5 // pred_check
        %p106 = pneg %p105
      $region14: #{tpu_custom_call.1} parent=5 // pred_check_branch
        %108 = sbr.rel (%p106) target = $region16
      $region15: #{tpu_custom_call.1} parent=5 // pred_region
        // Predicated region
        $region17: #{tpu_custom_call.1} parent=15 // pred_check
          %p109 = pneg %p54
        $region18: #{tpu_custom_call.1} parent=15 // pred_check_branch
          %111 = sbr.rel (%p109) target = $region20
        $region19: #{tpu_custom_call.1} parent=15 // pred_region
          %s112 = sand.u32 %s44, 1
          %s113 = scalar_lea.sflag [#allocation3], %s112
          %s114 = sand.u32 %s44, 1
          %s115 = smul.addr %s114, 8
          %s116 = scalar_lea.vmem [#allocation2], %s115
          %s118 = ssub.s32 128, 128
          %119 = vsyncadd %s113, %s118
          %s120 = sadd.s32 %s21, %s20
          %s121 = smul.addr %s120, 128
          %s122 = scalar_lea.hbm %s0, %s121
          %s124 = sshll.u32 %s116, 4
          %s125 = int_to_ptr.vmem [resolvable:$true] %s124
          %127 = dma.hbm_to_vmem [thread:$0]  %s122, 128, %s125, %s113
        $region20: #{tpu_custom_call.1} parent=15 // pred_fallthru
          _
      $region16: #{tpu_custom_call.1} parent=5 // pred_fallthru
        _
      %p128 = scmp.le.s32.totalorder 1, %s13
      %p129 = scmp.lt.s32.totalorder %s13, 3
      %p130 = pnand %p128, %p129
      %p131 = pneg %p130
      // Predicated region
      $region21: #{tpu_custom_call.1} parent=5 // pred_check
        _
      $region22: #{tpu_custom_call.1} parent=5 // pred_check_branch
        %133 = sbr.rel (%p130) target = $region24
      $region23: #{tpu_custom_call.1} parent=5 // pred_region
        %s134 = ssub.s32 %s13, 1
        %s135 = sand.u32 %s47, 1
        %s136 = scalar_lea.sflag [#allocation3], %s135
        %s137 = sand.u32 %s47, 1
        %s138 = smul.addr %s137, 8
        %s139 = scalar_lea.vmem [#allocation2], %s138
        // Predicated region
        $region25: #{tpu_custom_call.1} parent=23 // pred_check
          %p140 = pneg %p60
        $region26: #{tpu_custom_call.1} parent=23 // pred_check_branch
          %142 = sbr.rel (%p140) target = $region28
        $region27: #{tpu_custom_call.1} parent=23 // pred_region
          %143 = dma.done %s136, 128
        $region28: #{tpu_custom_call.1} parent=23 // pred_fallthru
          _
        %s144 = sand.u32 %s47, 1
        %s145 = scalar_lea.sflag [#allocation3], %s144
        %s146 = sand.u32 %s47, 1
        %s147 = smul.addr %s146, 8
        %s148 = scalar_lea.vmem [#allocation2], %s147
        %p149 = pneg %p60
        %p150 = pneg %p57
        %p151 = pneg %p90
        %p152 = pneg %p87
        %s153 = sand.u32 %s77, 1
        %s154 = scalar_lea.sflag [#allocation4], %s153
        %s155 = sand.u32 %s77, 1
        %s156 = smul.addr %s155, 24
        %s157 = scalar_lea.vmem [#allocation5], %s156
        %s158 = smul.u32 3, %s25
        %v159 = vld [vmem:[%s139] sm:$0xff]
        %160 = vst [vmem:[%s157] sm:$0xff] %v159
        %161 = vst [vmem:[%s157 + $0x8] sm:$0xff] %v159
        %162 = vst [vmem:[%s157 + $0x10] sm:$0xff] %v159
        %s163 = sand.u32 %s77, 1
        %s164 = scalar_lea.sflag [#allocation4], %s163
        %s165 = sand.u32 %s77, 1
        %s166 = smul.addr %s165, 24
        %s167 = scalar_lea.vmem [#allocation5], %s166
        // Predicated region
        $region29: #{tpu_custom_call.1} parent=23 // pred_check
          %p168 = pneg %p87
        $region30: #{tpu_custom_call.1} parent=23 // pred_check_branch
          %170 = sbr.rel (%p168) target = $region32
        $region31: #{tpu_custom_call.1} parent=23 // pred_region
          %s171 = smul.u32 3, %s25
          %s173 = ssub.s32 384, 384
          %174 = vsyncadd %s164, %s173
          %s175 = sadd.s32 %s24, %s171
          %s176 = smul.addr %s23, 3
          %s177 = sadd.s32 %s175, %s176
          %s178 = smul.addr %s177, 128
          %s179 = scalar_lea.hbm %s1, %s178
          %s180 = sshll.u32 %s167, 4
          %s181 = int_to_ptr.vmem [resolvable:$true] %s180
          %186 = dma.vmem_to_hbm [thread:$0]  %s181, 384, %s179, %s164, 128, 128, 8
        $region32: #{tpu_custom_call.1} parent=23 // pred_fallthru
          _
      $region24: #{tpu_custom_call.1} parent=5 // pred_fallthru
        _
      %p187 = scmp.le.s32.totalorder 2, %s13
      // Predicated region
      $region33: #{tpu_custom_call.1} parent=5 // pred_check
        %p188 = pneg %p187
      $region34: #{tpu_custom_call.1} parent=5 // pred_check_branch
        %190 = sbr.rel (%p188) target = $region36
      $region35: #{tpu_custom_call.1} parent=5 // pred_region
        %s191 = ssub.s32 %s13, 2
        // Predicated region
        $region37: #{tpu_custom_call.1} parent=35 // pred_check
          %p192 = pneg %p93
        $region38: #{tpu_custom_call.1} parent=35 // pred_check_branch
          %194 = sbr.rel (%p192) target = $region40
        $region39: #{tpu_custom_call.1} parent=35 // pred_region
          %s195 = sand.u32 %s78, 1
          %s196 = scalar_lea.sflag [#allocation4], %s195
          %s197 = sand.u32 %s78, 1
          %s198 = smul.addr %s197, 24
          %s199 = scalar_lea.vmem [#allocation5], %s198
          %200 = dma.done %s196, 384
        $region40: #{tpu_custom_call.1} parent=35 // pred_fallthru
          _
      $region36: #{tpu_custom_call.1} parent=5 // pred_fallthru
        _
    $region6: #{tpu_custom_call.1} parent=1 // loop_footer
      %s17 = sadd.s32 1, %s13
    $region7: #{tpu_custom_call.1} parent=1 // loop_footer_branch
      %12 = sbr.rel target = $region3
    $region8: #{tpu_custom_call.1} parent=1 // loop_exit
      _
    %201 = vsyncpa [#allocation3], 1
    %s202 = scalar_lea.sflag [#allocation3], 1
    %203 = vsyncpa %s202, 1
    %204 = vsyncpa [#allocation4], 1
    %s205 = scalar_lea.sflag [#allocation4], 1
    %206 = vsyncpa %s205, 1

</llo_original>
